<compile_context>
chip_gen: v7x
topology: tpu7x:2x2x1
jax: 0.10.0
libtpu: 0.0.40
codegen_flags: <defaults>
</compile_context>

<pallas_src>
import jax
import jax.numpy as jnp
from jax.experimental import pallas as pl
from jax.experimental.pallas import tpu as pltpu

LANE = 128          # TPU lane width: pad every feature axis to this
LN_EPS = 1e-5


def _round_up(x, m):
    return (x + m - 1) // m * m


# ----------------------------- Pallas kernel ------------------------------

def _make_fused_mlp_kernel(n_layers, hidden_real):
    """Build a fused kernel: (Linear -> LayerNorm -> SiLU) x (n_layers-1) -> Linear.

    Refs: x_ref, w_ref[0..n_layers-1], aux_ref, o_ref
      * weights are zero-padded to (LANE, LANE), stored [in, out] (= W.T of PyTorch)
      * aux rows: for each hidden layer i: [bias_i, gamma_i, beta_i]; then final bias.
        Padded lanes of gamma/beta/bias are 0.
    """
    inv_n = 1.0 / float(hidden_real)

    def kernel(*refs):
        x_ref = refs[0]
        w_refs = refs[1:1 + n_layers]
        aux_ref = refs[1 + n_layers]
        o_ref = refs[2 + n_layers]

        aux = aux_ref[...]          # (aux_rows, LANE), resident
        h = x_ref[...]              # (TB, LANE), padded lanes are 0

        for li in range(n_layers):
            y = jnp.dot(h, w_refs[li][...], preferred_element_type=jnp.float32)
            b = aux[3 * li:3 * li + 1]          # (1, LANE)
            y = y + b                            # padded lanes stay 0
            if li < n_layers - 1:
                g = aux[3 * li + 1:3 * li + 2]
                be = aux[3 * li + 2:3 * li + 3]
                # LayerNorm over the *real* hidden features. Padded lanes are 0,
                # so sum / sum-of-squares over all 128 lanes equal the real sums.
                s = jnp.sum(y, axis=-1, keepdims=True)
                ss = jnp.sum(y * y, axis=-1, keepdims=True)
                mean = s * inv_n
                var = jnp.maximum(ss * inv_n - mean * mean, 0.0)   # biased variance
                yn = (y - mean) * jax.lax.rsqrt(var + LN_EPS)
                yn = yn * g + be                 # padded gamma/beta = 0 -> re-zero pad lanes
                h = yn * jax.nn.sigmoid(yn)      # SiLU; SiLU(0)=0 keeps pad lanes 0
            else:
                h = y                            # final layer: out_type='linear'

        o_ref[...] = h.astype(o_ref.dtype)

    return kernel


# ----------------------------- Wrappers ------------------------------------

def init_mlp_params(key, input_dims, hidden_dims, output_dims, n_layers):
    """Init mirroring nn.Linear (uniform +/- 1/sqrt(fan_in)) and nn.LayerNorm
    (gamma=1, beta=0). Weights stored as [in, out] (transposed vs. PyTorch)."""
    params = []
    for i in range(n_layers):
        d_in = input_dims if i == 0 else hidden_dims
        d_out = output_dims if i == n_layers - 1 else hidden_dims
        key, kw, kb = jax.random.split(key, 3)
        bound = 1.0 / jnp.sqrt(jnp.float32(d_in))
        w = jax.random.uniform(kw, (d_in, d_out), jnp.float32, -bound, bound)
        b = jax.random.uniform(kb, (d_out,), jnp.float32, -bound, bound)
        if i < n_layers - 1:
            gamma = jnp.ones((d_out,), jnp.float32)
            beta = jnp.zeros((d_out,), jnp.float32)
            params.append(("hidden", w, b, gamma, beta))
        else:
            params.append(("final", w, b))
    return params


def pack_params(params):
    """Pad weights to (LANE, LANE); pack all bias/gamma/beta rows into one
    (ceil(rows/8)*8, LANE) aux array. Padded entries are zero."""
    ws, rows = [], []
    for p in params:
        if p[0] == "hidden":
            _, w, b, g, be = p
            vecs = [b, g, be]
        else:
            _, w, b = p
            vecs = [b]
        d_in, d_out = w.shape
        ws.append(jnp.zeros((LANE, LANE), jnp.float32).at[:d_in, :d_out].set(w))
        for v in vecs:
            rows.append(jnp.zeros((LANE,), jnp.float32).at[:d_out].set(v))
    n_rows = _round_up(len(rows), 8)
    aux = jnp.zeros((n_rows, LANE), jnp.float32).at[:len(rows)].set(jnp.stack(rows))
    return ws, aux


def mlp_forward_pallas(x, ws, aux, *, hidden_dims, output_dims, batch_tile=512):
    n_layers = len(ws)
    B, d_in = x.shape

    TB = min(batch_tile, _round_up(B, 8))       # rows per grid step (multiple of 8)
    B_pad = _round_up(B, TB)
    x_pad = jnp.zeros((B_pad, LANE), x.dtype).at[:B, :d_in].set(x)

    kernel = _make_fused_mlp_kernel(n_layers, hidden_dims)

    in_specs = [pl.BlockSpec((TB, LANE), lambda i: (i, 0))]                   # x: tiled over batch
    in_specs += [pl.BlockSpec((LANE, LANE), lambda i: (0, 0))                 # weights: resident
                 for _ in range(n_layers)]
    in_specs += [pl.BlockSpec(aux.shape, lambda i: (0, 0))]                   # aux: resident

    out = pl.pallas_call(
        kernel,
        out_shape=jax.ShapeDtypeStruct((B_pad, LANE), x.dtype),
        grid=(B_pad // TB,),
        in_specs=in_specs,
        out_specs=pl.BlockSpec((TB, LANE), lambda i: (i, 0)),
        compiler_params=pltpu.CompilerParams(
            dimension_semantics=("parallel",)),                               # v7x: 2 TCs
    )(x_pad, *ws, aux)

    return out[:B, :output_dims]


def make_mlp(params, *, hidden_dims, output_dims, batch_tile=512):
    ws, aux = pack_params(params)

    def forward(x):
        return mlp_forward_pallas(x, ws, aux, hidden_dims=hidden_dims,
                                  output_dims=output_dims, batch_tile=batch_tile)

    return jax.jit(forward)


# ----------------------------- Pure-JAX reference --------------------------

def mlp_reference(x, params):
    h = x
    for p in params:
        if p[0] == "hidden":
            _, w, b, g, be = p
            y = h @ w + b
            mean = jnp.mean(y, axis=-1, keepdims=True)
            var = jnp.mean((y - mean) ** 2, axis=-1, keepdims=True)
            yn = (y - mean) * jax.lax.rsqrt(var + LN_EPS) * g + be
            h = yn * jax.nn.sigmoid(yn)
        else:
            _, w, b = p
            h = h @ w + b
    return h


# TODO(synk): out_type='gaussian'/'sigmoid'/'softmax' heads and ELU/ReLU config
# activations are not implemented; only the default 'linear' head with SiLU
# hidden activations (the module's default forward path per load_config()).

if __name__ == "__main__":
    batch, input_dims, hidden_dims, output_dims, n_layers = 8, 16, 32, 8, 3

    key = jax.random.PRNGKey(0)
    kx, kp, kx2 = jax.random.split(key, 3)
    x = jax.random.normal(kx, (batch, input_dims), jnp.float32)
    params = init_mlp_params(kp, input_dims, hidden_dims, output_dims, n_layers)

    mlp = make_mlp(params, hidden_dims=hidden_dims, output_dims=output_dims)
    out = jax.block_until_ready(mlp(x))
    ref = mlp_reference(x, params)
    assert out.shape == (batch, output_dims)
    assert jnp.allclose(out, ref, atol=1e-4, rtol=1e-4), float(jnp.max(jnp.abs(out - ref)))

    # Second check: non-multiple batch + real multi-step grid (exercises padding/tiling).
    x2 = jax.random.normal(kx2, (300, input_dims), jnp.float32)
    mlp2 = make_mlp(params, hidden_dims=hidden_dims, output_dims=output_dims, batch_tile=128)
    out2 = jax.block_until_ready(mlp2(x2))
    ref2 = mlp_reference(x2, params)
    assert out2.shape == (300, output_dims)
    assert jnp.allclose(out2, ref2, atol=1e-4, rtol=1e-4), float(jnp.max(jnp.abs(out2 - ref2)))

    print("KERNEL_OK")
</pallas_src>

<mosaic_0001>
module attributes {stable_mosaic.version = 11 : i64} {
  func.func @kernel(%arg0: i32, %arg1: memref<8x128xf32, #tpu.memory_space<vmem>>, %arg2: memref<128x128xf32, #tpu.memory_space<vmem>>, %arg3: memref<128x128xf32, #tpu.memory_space<vmem>>, %arg4: memref<128x128xf32, #tpu.memory_space<vmem>>, %arg5: memref<8x128xf32, #tpu.memory_space<vmem>>, %arg6: memref<8x128xf32, #tpu.memory_space<vmem>>) attributes {dimension_semantics = [#tpu.dimension_semantics<parallel>], iteration_bounds = array<i64: 1>, scalar_prefetch = 0 : i64, scratch_operands = 0 : i64, tpu.core_type = #tpu.core_type<tc>, window_params = [{transform_indices = @transform_0, window_bounds = array<i64: 8, 128>}, {pipeline_mode = #tpu.pipeline_mode<synchronous>, transform_indices = @transform_1, window_bounds = array<i64: 128, 128>}, {pipeline_mode = #tpu.pipeline_mode<synchronous>, transform_indices = @transform_2, window_bounds = array<i64: 128, 128>}, {pipeline_mode = #tpu.pipeline_mode<synchronous>, transform_indices = @transform_3, window_bounds = array<i64: 128, 128>}, {pipeline_mode = #tpu.pipeline_mode<synchronous>, transform_indices = @transform_4, window_bounds = array<i64: 8, 128>}, {transform_indices = @transform_5, window_bounds = array<i64: 8, 128>}]} {
    %c0 = arith.constant 0 : index
    %c0_0 = arith.constant 0 : index
    %0 = vector.load %arg5[%c0, %c0_0] : memref<8x128xf32, #tpu.memory_space<vmem>>, vector<8x128xf32>
    %c0_1 = arith.constant 0 : index
    %c0_2 = arith.constant 0 : index
    %1 = vector.load %arg1[%c0_1, %c0_2] : memref<8x128xf32, #tpu.memory_space<vmem>>, vector<8x128xf32>
    %c0_3 = arith.constant 0 : index
    %c0_4 = arith.constant 0 : index
    %2 = vector.load %arg2[%c0_3, %c0_4] : memref<128x128xf32, #tpu.memory_space<vmem>>, vector<128x128xf32>
    %cst = arith.constant dense<0.000000e+00> : vector<8x128xf32>
    %3 = tpu.matmul %1, %2, %cst {dimension_numbers = #tpu.dot_dimension_numbers<[1], [0], [0], [1], [0, 0, 1, 1], [], []>} : vector<8x128xf32>, vector<128x128xf32>, vector<8x128xf32> -> vector<8x128xf32>
    %4 = vector.extract_strided_slice %0 {offsets = [0, 0], sizes = [1, 128], strides = [1, 1]} : vector<8x128xf32> to vector<1x128xf32>
    %5 = vector.broadcast %4 : vector<1x128xf32> to vector<8x128xf32>
    %6 = arith.addf %3, %5 : vector<8x128xf32>
    %7 = vector.extract_strided_slice %0 {offsets = [1, 0], sizes = [1, 128], strides = [1, 1]} : vector<8x128xf32> to vector<1x128xf32>
    %8 = vector.extract_strided_slice %0 {offsets = [2, 0], sizes = [1, 128], strides = [1, 1]} : vector<8x128xf32> to vector<1x128xf32>
    %cst_5 = arith.constant dense<0.000000e+00> : vector<8xf32>
    %9 = vector.multi_reduction <add>, %6, %cst_5 [1] : vector<8x128xf32> to vector<8xf32>
    %10 = vector.shape_cast %9 : vector<8xf32> to vector<8x1xf32>
    %11 = arith.mulf %6, %6 : vector<8x128xf32>
    %cst_6 = arith.constant dense<0.000000e+00> : vector<8xf32>
    %12 = vector.multi_reduction <add>, %11, %cst_6 [1] : vector<8x128xf32> to vector<8xf32>
    %13 = vector.shape_cast %12 : vector<8xf32> to vector<8x1xf32>
    %cst_7 = arith.constant 3.125000e-02 : f32
    %14 = vector.broadcast %cst_7 : f32 to vector<8x1xf32>
    %15 = arith.mulf %10, %14 : vector<8x1xf32>
    %cst_8 = arith.constant 3.125000e-02 : f32
    %16 = vector.broadcast %cst_8 : f32 to vector<8x1xf32>
    %17 = arith.mulf %13, %16 : vector<8x1xf32>
    %18 = arith.mulf %15, %15 : vector<8x1xf32>
    %19 = arith.subf %17, %18 : vector<8x1xf32>
    %cst_9 = arith.constant 0.000000e+00 : f32
    %20 = vector.broadcast %cst_9 : f32 to vector<8x1xf32>
    %21 = arith.maximumf %19, %20 : vector<8x1xf32>
    %22 = vector.broadcast %15 : vector<8x1xf32> to vector<8x128xf32>
    %23 = arith.subf %6, %22 : vector<8x128xf32>
    %cst_10 = arith.constant 9.99999974E-6 : f32
    %24 = vector.broadcast %cst_10 : f32 to vector<8x1xf32>
    %25 = arith.addf %21, %24 : vector<8x1xf32>
    %26 = math.rsqrt %25 : vector<8x1xf32>
    %27 = vector.broadcast %26 : vector<8x1xf32> to vector<8x128xf32>
    %28 = arith.mulf %23, %27 : vector<8x128xf32>
    %29 = vector.broadcast %7 : vector<1x128xf32> to vector<8x128xf32>
    %30 = arith.mulf %28, %29 : vector<8x128xf32>
    %31 = vector.broadcast %8 : vector<1x128xf32> to vector<8x128xf32>
    %32 = arith.addf %30, %31 : vector<8x128xf32>
    %33 = arith.negf %32 : vector<8x128xf32>
    %34 = math.exp %33 : vector<8x128xf32>
    %cst_11 = arith.constant 1.000000e+00 : f32
    %35 = vector.broadcast %cst_11 : f32 to vector<8x128xf32>
    %36 = arith.addf %35, %34 : vector<8x128xf32>
    %37 = arith.divf %35, %36 : vector<8x128xf32>
    %38 = arith.mulf %32, %37 : vector<8x128xf32>
    %c0_12 = arith.constant 0 : index
    %c0_13 = arith.constant 0 : index
    %39 = vector.load %arg3[%c0_12, %c0_13] : memref<128x128xf32, #tpu.memory_space<vmem>>, vector<128x128xf32>
    %cst_14 = arith.constant dense<0.000000e+00> : vector<8x128xf32>
    %40 = tpu.matmul %38, %39, %cst_14 {dimension_numbers = #tpu.dot_dimension_numbers<[1], [0], [0], [1], [0, 0, 1, 1], [], []>} : vector<8x128xf32>, vector<128x128xf32>, vector<8x128xf32> -> vector<8x128xf32>
    %41 = vector.extract_strided_slice %0 {offsets = [3, 0], sizes = [1, 128], strides = [1, 1]} : vector<8x128xf32> to vector<1x128xf32>
    %42 = vector.broadcast %41 : vector<1x128xf32> to vector<8x128xf32>
    %43 = arith.addf %40, %42 : vector<8x128xf32>
    %44 = vector.extract_strided_slice %0 {offsets = [4, 0], sizes = [1, 128], strides = [1, 1]} : vector<8x128xf32> to vector<1x128xf32>
    %45 = vector.extract_strided_slice %0 {offsets = [5, 0], sizes = [1, 128], strides = [1, 1]} : vector<8x128xf32> to vector<1x128xf32>
    %cst_15 = arith.constant dense<0.000000e+00> : vector<8xf32>
    %46 = vector.multi_reduction <add>, %43, %cst_15 [1] : vector<8x128xf32> to vector<8xf32>
    %47 = vector.shape_cast %46 : vector<8xf32> to vector<8x1xf32>
    %48 = arith.mulf %43, %43 : vector<8x128xf32>
    %cst_16 = arith.constant dense<0.000000e+00> : vector<8xf32>
    %49 = vector.multi_reduction <add>, %48, %cst_16 [1] : vector<8x128xf32> to vector<8xf32>
    %50 = vector.shape_cast %49 : vector<8xf32> to vector<8x1xf32>
    %cst_17 = arith.constant 3.125000e-02 : f32
    %51 = vector.broadcast %cst_17 : f32 to vector<8x1xf32>
    %52 = arith.mulf %47, %51 : vector<8x1xf32>
    %cst_18 = arith.constant 3.125000e-02 : f32
    %53 = vector.broadcast %cst_18 : f32 to vector<8x1xf32>
    %54 = arith.mulf %50, %53 : vector<8x1xf32>
    %55 = arith.mulf %52, %52 : vector<8x1xf32>
    %56 = arith.subf %54, %55 : vector<8x1xf32>
    %cst_19 = arith.constant 0.000000e+00 : f32
    %57 = vector.broadcast %cst_19 : f32 to vector<8x1xf32>
    %58 = arith.maximumf %56, %57 : vector<8x1xf32>
    %59 = vector.broadcast %52 : vector<8x1xf32> to vector<8x128xf32>
    %60 = arith.subf %43, %59 : vector<8x128xf32>
    %cst_20 = arith.constant 9.99999974E-6 : f32
    %61 = vector.broadcast %cst_20 : f32 to vector<8x1xf32>
    %62 = arith.addf %58, %61 : vector<8x1xf32>
    %63 = math.rsqrt %62 : vector<8x1xf32>
    %64 = vector.broadcast %63 : vector<8x1xf32> to vector<8x128xf32>
    %65 = arith.mulf %60, %64 : vector<8x128xf32>
    %66 = vector.broadcast %44 : vector<1x128xf32> to vector<8x128xf32>
    %67 = arith.mulf %65, %66 : vector<8x128xf32>
    %68 = vector.broadcast %45 : vector<1x128xf32> to vector<8x128xf32>
    %69 = arith.addf %67, %68 : vector<8x128xf32>
    %70 = arith.negf %69 : vector<8x128xf32>
    %71 = math.exp %70 : vector<8x128xf32>
    %cst_21 = arith.constant 1.000000e+00 : f32
    %72 = vector.broadcast %cst_21 : f32 to vector<8x128xf32>
    %73 = arith.addf %72, %71 : vector<8x128xf32>
    %74 = arith.divf %72, %73 : vector<8x128xf32>
    %75 = arith.mulf %69, %74 : vector<8x128xf32>
    %c0_22 = arith.constant 0 : index
    %c0_23 = arith.constant 0 : index
    %76 = vector.load %arg4[%c0_22, %c0_23] : memref<128x128xf32, #tpu.memory_space<vmem>>, vector<128x128xf32>
    %cst_24 = arith.constant dense<0.000000e+00> : vector<8x128xf32>
    %77 = tpu.matmul %75, %76, %cst_24 {dimension_numbers = #tpu.dot_dimension_numbers<[1], [0], [0], [1], [0, 0, 1, 1], [], []>} : vector<8x128xf32>, vector<128x128xf32>, vector<8x128xf32> -> vector<8x128xf32>
    %78 = vector.extract_strided_slice %0 {offsets = [6, 0], sizes = [1, 128], strides = [1, 1]} : vector<8x128xf32> to vector<1x128xf32>
    %79 = vector.broadcast %78 : vector<1x128xf32> to vector<8x128xf32>
    %80 = arith.addf %77, %79 : vector<8x128xf32>
    %c0_25 = arith.constant 0 : index
    %c0_26 = arith.constant 0 : index
    %81 = vector.load %arg6[%c0_25, %c0_26] : memref<8x128xf32, #tpu.memory_space<vmem>>, vector<8x128xf32>
    tpu.vector_store %arg6[%c0_25, %c0_26], %80 {strides = array<i32>} : memref<8x128xf32, #tpu.memory_space<vmem>>, vector<8x128xf32>,
    return
  }
  func.func @transform_0(%arg0: i32) -> (i32, i32) {
    %c0_i32 = arith.constant 0 : i32
    %c0_i32_0 = arith.constant 0 : i32
    return %arg0, %c0_i32 : i32, i32
  }
  func.func @transform_1(%arg0: i32) -> (i32, i32) {
    %c0_i32 = arith.constant 0 : i32
    %c0_i32_0 = arith.constant 0 : i32
    %c0_i32_1 = arith.constant 0 : i32
    return %c0_i32, %c0_i32_0 : i32, i32
  }
  func.func @transform_2(%arg0: i32) -> (i32, i32) {
    %c0_i32 = arith.constant 0 : i32
    %c0_i32_0 = arith.constant 0 : i32
    %c0_i32_1 = arith.constant 0 : i32
    return %c0_i32, %c0_i32_0 : i32, i32
  }
  func.func @transform_3(%arg0: i32) -> (i32, i32) {
    %c0_i32 = arith.constant 0 : i32
    %c0_i32_0 = arith.constant 0 : i32
    %c0_i32_1 = arith.constant 0 : i32
    return %c0_i32, %c0_i32_0 : i32, i32
  }
  func.func @transform_4(%arg0: i32) -> (i32, i32) {
    %c0_i32 = arith.constant 0 : i32
    %c0_i32_0 = arith.constant 0 : i32
    %c0_i32_1 = arith.constant 0 : i32
    return %c0_i32, %c0_i32_0 : i32, i32
  }
  func.func @transform_5(%arg0: i32) -> (i32, i32) {
    %c0_i32 = arith.constant 0 : i32
    %c0_i32_0 = arith.constant 0 : i32
    return %arg0, %c0_i32 : i32, i32
  }
}

</mosaic_0001>

<llo_original>
// kernel: forward.1
$region0: #{forward.1}
  #allocation0 [shape = 'u32[]', space=smem, size = 0x4, offset = 0x4, fixed_abs, tag = 'smem constant byte address 0x4 - core index']
  #allocation1 [shape = 'u32[144,128]{1,0:T(1,128)}', space=vmem, size = 0x12000, scoped, tag = 'internal scratch']
  %s0 = inlined_call_operand.vmem [shape: f32[8,128], index: 0, kind: input, shape index: {}]
  %s1 = inlined_call_operand.hbm [shape: f32[128,128], index: 1, kind: input, shape index: {}]
  %s2 = inlined_call_operand.hbm [shape: f32[128,128], index: 2, kind: input, shape index: {}]
  %s3 = inlined_call_operand.hbm [shape: f32[128,128], index: 3, kind: input, shape index: {}]
  %s4 = inlined_call_operand.vmem [shape: f32[8,128], index: 4, kind: input, shape index: {}]
  %s5 = inlined_call_operand.hbm [shape: f32[8,128], index: 5, kind: output, shape index: {}]
  %s6 = sld [smem:[#allocation0]]
  $region42: #{forward.1} parent=0
    _
  %s8 = ssub.s32 1, %s6
  %s9 = scalar_select 0, %s8, %s6
  $region1: #{forward.1} parent=0
    #allocation2 [shape = 'u8[65536]{0}', space=vmem, size = 0x10000, scoped, tag = 'input window, operand 1, single buffered']
    #allocation3 [shape = 's32[1]{0}', space=sflag, size = 0x4, scoped, tag = 'scoped memory for forward.1']
    #allocation4 [shape = 's32[1]{0}', space=sflag, size = 0x4, scoped, tag = 'scoped memory for forward.1']
    #allocation5 [shape = 'u8[65536]{0}', space=vmem, size = 0x10000, scoped, tag = 'input window, operand 2, single buffered']
    #allocation6 [shape = 's32[1]{0}', space=sflag, size = 0x4, scoped, tag = 'scoped memory for forward.1']
    #allocation7 [shape = 'u8[65536]{0}', space=vmem, size = 0x10000, scoped, tag = 'input window, operand 3, single buffered']
    #allocation8 [shape = 'u8[4096]{0}', space=vmem, size = 0x1000, scoped, tag = 'output window, operand 0, single buffered']
    %10 = vsyncpa [#allocation3], 0
    %11 = vsyncpa [#allocation6], 0
    %12 = vsyncpa [#allocation4], 0
    // Predicated region
    $region2: #{forward.1} parent=1 // pred_check
      _
    $region3: #{forward.1} parent=1 // pred_check_branch
      %14 = sbr.rel (0) target = $region5
    $region4: #{forward.1} parent=1 // pred_region
      _
    $region5: #{forward.1} parent=1 // pred_fallthru
      _
    // Predicated region
    $region6: #{forward.1} parent=1 // pred_check
      _
    $region7: #{forward.1} parent=1 // pred_check_branch
      %16 = sbr.rel (0) target = $region9
    $region8: #{forward.1} parent=1 // pred_region
      %s18 = ssub.s32 2048, 2048
      %19 = vsyncadd [#allocation3], %s18
      %s20 = sshll.u32 [#allocation2], 4
      %s21 = int_to_ptr.vmem [resolvable:$true] %s20
      %26 = dma.hbm_to_vmem [thread:$0]  %s1, 2048, %s21, [#allocation3], 128, 128, 8
    $region9: #{forward.1} parent=1 // pred_fallthru
      _
    // Predicated region
    $region10: #{forward.1} parent=1 // pred_check
      _
    $region11: #{forward.1} parent=1 // pred_check_branch
      %28 = sbr.rel (0) target = $region13
    $region12: #{forward.1} parent=1 // pred_region
      %s30 = ssub.s32 2048, 2048
      %31 = vsyncadd [#allocation6], %s30
      %s32 = sshll.u32 [#allocation5], 4
      %s33 = int_to_ptr.vmem [resolvable:$true] %s32
      %38 = dma.hbm_to_vmem [thread:$0]  %s2, 2048, %s33, [#allocation6], 128, 128, 8
    $region13: #{forward.1} parent=1 // pred_fallthru
      _
    // Predicated region
    $region14: #{forward.1} parent=1 // pred_check
      _
    $region15: #{forward.1} parent=1 // pred_check_branch
      %40 = sbr.rel (0) target = $region17
    $region16: #{forward.1} parent=1 // pred_region
      %s42 = ssub.s32 2048, 2048
      %43 = vsyncadd [#allocation6], %s42
      %s44 = sshll.u32 [#allocation7], 4
      %s45 = int_to_ptr.vmem [resolvable:$true] %s44
      %50 = dma.hbm_to_vmem [thread:$0]  %s3, 2048, %s45, [#allocation6], 128, 128, 8
    $region17: #{forward.1} parent=1 // pred_fallthru
      _
    // Predicated region
    $region18: #{forward.1} parent=1 // pred_check
      _
    $region19: #{forward.1} parent=1 // pred_check_branch
      %52 = sbr.rel (0) target = $region21
    $region20: #{forward.1} parent=1 // pred_region
      _
    $region21: #{forward.1} parent=1 // pred_fallthru
      _
    // Predicated region
    $region22: #{forward.1} parent=1 // pred_check
      _
    $region23: #{forward.1} parent=1 // pred_check_branch
      %54 = sbr.rel (0) target = $region25
    $region24: #{forward.1} parent=1 // pred_region
      %55 = dma.done [#allocation3], 2048
    $region25: #{forward.1} parent=1 // pred_fallthru
      _
    // Predicated region
    $region26: #{forward.1} parent=1 // pred_check
      _
    $region27: #{forward.1} parent=1 // pred_check_branch
      %57 = sbr.rel (0) target = $region29
    $region28: #{forward.1} parent=1 // pred_region
      %58 = dma.done [#allocation6], 2048
    $region29: #{forward.1} parent=1 // pred_fallthru
      _
    // Predicated region
    $region30: #{forward.1} parent=1 // pred_check
      _
    $region31: #{forward.1} parent=1 // pred_check_branch
      %60 = sbr.rel (0) target = $region33
    $region32: #{forward.1} parent=1 // pred_region
      %61 = dma.done [#allocation6], 2048
    $region33: #{forward.1} parent=1 // pred_fallthru
      _
    %v62 = vld [vmem:[%s4] sm:$0xff]
    %v63 = vld [vmem:[%s0] sm:$0xff]
    %v64 = vld [vmem:[#allocation2] sm:$0xff]
    %v65 = vld [vmem:[#allocation2 + $0x8] sm:$0xff]
    %v66 = vld [vmem:[#allocation2 + $0x10] sm:$0xff]
    %v67 = vld [vmem:[#allocation2 + $0x18] sm:$0xff]
    %v68 = vld [vmem:[#allocation2 + $0x20] sm:$0xff]
    %v69 = vld [vmem:[#allocation2 + $0x28] sm:$0xff]
    %v70 = vld [vmem:[#allocation2 + $0x30] sm:$0xff]
    %v71 = vld [vmem:[#allocation2 + $0x38] sm:$0xff]
    %v72 = vld [vmem:[#allocation2 + $0x40] sm:$0xff]
    %v73 = vld [vmem:[#allocation2 + $0x48] sm:$0xff]
    %v74 = vld [vmem:[#allocation2 + $0x50] sm:$0xff]
    %v75 = vld [vmem:[#allocation2 + $0x58] sm:$0xff]
    %v76 = vld [vmem:[#allocation2 + $0x60] sm:$0xff]
    %v77 = vld [vmem:[#allocation2 + $0x68] sm:$0xff]
    %v78 = vld [vmem:[#allocation2 + $0x70] sm:$0xff]
    %v79 = vld [vmem:[#allocation2 + $0x78] sm:$0xff]
    %v80 = vlaneseq
    %v81 = vshrl.u32 %v80, 7
    %v82 = vsub.s32 0, %v81
    %v83 = vrot.slane %v62, %v82
    %84 = vmatprep.subr.mxu0 0.0
    %85 = vmatpush1.msra.mxu0 %v64
    %86 = vmatprep.subr.mxu0 0.0
    %87 = vmatpush1.msra.mxu0 %v65
    %88 = vmatprep.subr.mxu0 0.0
    %89 = vmatpush1.msra.mxu0 %v66
    %90 = vmatprep.subr.mxu0 0.0
    %91 = vmatpush1.msra.mxu0 %v67
    %92 = vmatprep.subr.mxu0 0.0
    %93 = vmatpush1.msra.mxu0 %v68
    %94 = vmatprep.subr.mxu0 0.0
    %95 = vmatpush1.msra.mxu0 %v69
    %96 = vmatprep.subr.mxu0 0.0
    %97 = vmatpush1.msra.mxu0 %v70
    %98 = vmatprep.subr.mxu0 0.0
    %99 = vmatpush1.msra.mxu0 %v71
    %100 = vmatprep.subr.mxu0 0.0
    %101 = vmatpush1.msra.mxu0 %v72
    %102 = vmatprep.subr.mxu0 0.0
    %103 = vmatpush1.msra.mxu0 %v73
    %104 = vmatprep.subr.mxu0 0.0
    %105 = vmatpush1.msra.mxu0 %v74
    %106 = vmatprep.subr.mxu0 0.0
    %107 = vmatpush1.msra.mxu0 %v75
    %108 = vmatprep.subr.mxu0 0.0
    %109 = vmatpush1.msra.mxu0 %v76
    %110 = vmatprep.subr.mxu0 0.0
    %111 = vmatpush1.msra.mxu0 %v77
    %112 = vmatprep.subr.mxu0 0.0
    %113 = vmatpush1.msra.mxu0 %v78
    %114 = vmatprep.subr.mxu0 0.0
    %115 = vmatpush1.msra.mxu0 %v79
    %116 = vmatprep.subr.mxu0 0.0
    %117 = vmatpush1.msra.mxu0 0.0
    %118 = vmatprep.subr.mxu0 0.0
    %119 = vmatpush1.msra.mxu0 0.0
    %120 = vmatprep.subr.mxu0 0.0
    %121 = vmatpush1.msra.mxu0 0.0
    %122 = vmatprep.subr.mxu0 0.0
    %123 = vmatpush1.msra.mxu0 0.0
    %124 = vmatprep.subr.mxu0 0.0
    %125 = vmatpush1.msra.mxu0 0.0
    %126 = vmatprep.subr.mxu0 0.0
    %127 = vmatpush1.msra.mxu0 0.0
    %128 = vmatprep.subr.mxu0 0.0
    %129 = vmatpush1.msra.mxu0 0.0
    %130 = vmatprep.subr.mxu0 0.0
    %131 = vmatpush1.msra.mxu0 0.0
    %132 = vmatprep.subr.mxu0 0.0
    %133 = vmatpush1.msra.mxu0 0.0
    %134 = vmatprep.subr.mxu0 0.0
    %135 = vmatpush1.msra.mxu0 0.0
    %136 = vmatprep.subr.mxu0 0.0
    %137 = vmatpush1.msra.mxu0 0.0
    %138 = vmatprep.subr.mxu0 0.0
    %139 = vmatpush1.msra.mxu0 0.0
    %140 = vmatprep.subr.mxu0 0.0
    %141 = vmatpush1.msra.mxu0 0.0
    %142 = vmatprep.subr.mxu0 0.0
    %143 = vmatpush1.msra.mxu0 0.0
    %144 = vmatprep.subr.mxu0 0.0
    %145 = vmatpush1.msra.mxu0 0.0
    %146 = vmatprep.subr.mxu0 0.0
    %147 = vmatpush1.msra.mxu0 0.0
    %148 = vmatprep.mubr.f32.mxu0 0.0
    %149 = vmatmul.mubr.f32.gmra.mrb[0].mxu0 %v63
    %v150 = vpop.f32.mrb[0].mxu0
    %v151 = vadd.f32 %v83, %v150
    %v152 = vpop.f32.mrb[0].mxu0
    %153 = vdwg.mxu0
    %154 = vadd.xlane.f32.xlu0 %v151
    %v155 = vpop.xlane.xlu0 %154
    %v156 = vmul.f32 %v151, %v151
    %157 = vadd.xlane.f32.xlu0 %v156
    %v158 = vpop.xlane.xlu0 %157
    %v159 = vmul.f32 %v155, 0.03125
    %v160 = vmul.f32 %v158, 0.03125
    %v161 = vmul.f32 %v159, %v159
    %v162 = vsub.f32 %v160, %v161
    %v163 = vmax.f32 %v162, 0.0
    %v164 = vsub.f32 %v151, %v159
    %v165 = vadd.f32 %v163, 1e-05
    %v166 = vrsqrt.pop %v165
    %v167 = vmul.f32 %v164, %v166
    %v168 = vlaneseq
    %v169 = vshrl.u32 %v168, 7
    %v170 = vsub.s32 1, %v169
    %v171 = vrot.slane %v62, %v170
    %v172 = vmul.f32 %v167, %v171
    %v173 = vlaneseq
    %v174 = vshrl.u32 %v173, 7
    %v175 = vsub.s32 2, %v174
    %v176 = vrot.slane %v62, %v175
    %v177 = vadd.f32 %v172, %v176
    %v178 = vxor.u32 %v177, 2147483648
    %v179 = vmul.f32 %v178, 1.442695
    %v180 = vpow.pop %v179
    %v181 = vadd.f32 %v180, 1.0
    %v182 = vrcp.pop %v181
    %v183 = vmul.f32 1.0, %v182
    %v184 = vmul.f32 %v177, %v183
    %v185 = vld [vmem:[#allocation5] sm:$0xff]
    %v186 = vld [vmem:[#allocation5 + $0x8] sm:$0xff]
    %v187 = vld [vmem:[#allocation5 + $0x10] sm:$0xff]
    %v188 = vld [vmem:[#allocation5 + $0x18] sm:$0xff]
    %v189 = vld [vmem:[#allocation5 + $0x20] sm:$0xff]
    %v190 = vld [vmem:[#allocation5 + $0x28] sm:$0xff]
    %v191 = vld [vmem:[#allocation5 + $0x30] sm:$0xff]
    %v192 = vld [vmem:[#allocation5 + $0x38] sm:$0xff]
    %v193 = vld [vmem:[#allocation5 + $0x40] sm:$0xff]
    %v194 = vld [vmem:[#allocation5 + $0x48] sm:$0xff]
    %v195 = vld [vmem:[#allocation5 + $0x50] sm:$0xff]
    %v196 = vld [vmem:[#allocation5 + $0x58] sm:$0xff]
    %v197 = vld [vmem:[#allocation5 + $0x60] sm:$0xff]
    %v198 = vld [vmem:[#allocation5 + $0x68] sm:$0xff]
    %v199 = vld [vmem:[#allocation5 + $0x70] sm:$0xff]
    %v200 = vld [vmem:[#allocation5 + $0x78] sm:$0xff]
    %v201 = vlaneseq
    %v202 = vshrl.u32 %v201, 7
    %v203 = vsub.s32 3, %v202
    %v204 = vrot.slane %v62, %v203
    %205 = vmatprep.subr.mxu0 0.0
    %206 = vmatpush1.msra.mxu0 %v185
    %207 = vmatprep.subr.mxu0 0.0
    %208 = vmatpush1.msra.mxu0 %v186
    %209 = vmatprep.subr.mxu0 0.0
    %210 = vmatpush1.msra.mxu0 %v187
    %211 = vmatprep.subr.mxu0 0.0
    %212 = vmatpush1.msra.mxu0 %v188
    %213 = vmatprep.subr.mxu0 0.0
    %214 = vmatpush1.msra.mxu0 %v189
    %215 = vmatprep.subr.mxu0 0.0
    %216 = vmatpush1.msra.mxu0 %v190
    %217 = vmatprep.subr.mxu0 0.0
    %218 = vmatpush1.msra.mxu0 %v191
    %219 = vmatprep.subr.mxu0 0.0
    %220 = vmatpush1.msra.mxu0 %v192
    %221 = vmatprep.subr.mxu0 0.0
    %222 = vmatpush1.msra.mxu0 %v193
    %223 = vmatprep.subr.mxu0 0.0
    %224 = vmatpush1.msra.mxu0 %v194
    %225 = vmatprep.subr.mxu0 0.0
    %226 = vmatpush1.msra.mxu0 %v195
    %227 = vmatprep.subr.mxu0 0.0
    %228 = vmatpush1.msra.mxu0 %v196
    %229 = vmatprep.subr.mxu0 0.0
    %230 = vmatpush1.msra.mxu0 %v197
    %231 = vmatprep.subr.mxu0 0.0
    %232 = vmatpush1.msra.mxu0 %v198
    %233 = vmatprep.subr.mxu0 0.0
    %234 = vmatpush1.msra.mxu0 %v199
    %235 = vmatprep.subr.mxu0 0.0
    %236 = vmatpush1.msra.mxu0 %v200
    %237 = vmatprep.subr.mxu0 0.0
    %238 = vmatpush1.msra.mxu0 0.0
    %239 = vmatprep.subr.mxu0 0.0
    %240 = vmatpush1.msra.mxu0 0.0
    %241 = vmatprep.subr.mxu0 0.0
    %242 = vmatpush1.msra.mxu0 0.0
    %243 = vmatprep.subr.mxu0 0.0
    %244 = vmatpush1.msra.mxu0 0.0
    %245 = vmatprep.subr.mxu0 0.0
    %246 = vmatpush1.msra.mxu0 0.0
    %247 = vmatprep.subr.mxu0 0.0
    %248 = vmatpush1.msra.mxu0 0.0
    %249 = vmatprep.subr.mxu0 0.0
    %250 = vmatpush1.msra.mxu0 0.0
    %251 = vmatprep.subr.mxu0 0.0
    %252 = vmatpush1.msra.mxu0 0.0
    %253 = vmatprep.subr.mxu0 0.0
    %254 = vmatpush1.msra.mxu0 0.0
    %255 = vmatprep.subr.mxu0 0.0
    %256 = vmatpush1.msra.mxu0 0.0
    %257 = vmatprep.subr.mxu0 0.0
    %258 = vmatpush1.msra.mxu0 0.0
    %259 = vmatprep.subr.mxu0 0.0
    %260 = vmatpush1.msra.mxu0 0.0
    %261 = vmatprep.subr.mxu0 0.0
    %262 = vmatpush1.msra.mxu0 0.0
    %263 = vmatprep.subr.mxu0 0.0
    %264 = vmatpush1.msra.mxu0 0.0
    %265 = vmatprep.subr.mxu0 0.0
    %266 = vmatpush1.msra.mxu0 0.0
    %267 = vmatprep.subr.mxu0 0.0
    %268 = vmatpush1.msra.mxu0 0.0
    %269 = vmatprep.mubr.f32.mxu0 0.0
    %270 = vmatmul.mubr.f32.gmra.mrb[0].mxu0 %v184
    %v271 = vpop.f32.mrb[0].mxu0
    %v272 = vadd.f32 %v204, %v271
    %v273 = vpop.f32.mrb[0].mxu0
    %274 = vdwg.mxu0
    %275 = vadd.xlane.f32.xlu0 %v272
    %v276 = vpop.xlane.xlu0 %275
    %v277 = vmul.f32 %v272, %v272
    %278 = vadd.xlane.f32.xlu0 %v277
    %v279 = vpop.xlane.xlu0 %278
    %v280 = vmul.f32 %v276, 0.03125
    %v281 = vmul.f32 %v279, 0.03125
    %v282 = vmul.f32 %v280, %v280
    %v283 = vsub.f32 %v281, %v282
    %v284 = vmax.f32 %v283, 0.0
    %v285 = vsub.f32 %v272, %v280
    %v286 = vadd.f32 %v284, 1e-05
    %v287 = vrsqrt.pop %v286
    %v288 = vmul.f32 %v285, %v287
    %v289 = vlaneseq
    %v290 = vshrl.u32 %v289, 7
    %v291 = vsub.s32 4, %v290
    %v292 = vrot.slane %v62, %v291
    %v293 = vmul.f32 %v288, %v292
    %v294 = vlaneseq
    %v295 = vshrl.u32 %v294, 7
    %v296 = vsub.s32 5, %v295
    %v297 = vrot.slane %v62, %v296
    %v298 = vadd.f32 %v293, %v297
    %v299 = vxor.u32 %v298, 2147483648
    %v300 = vmul.f32 %v299, 1.442695
    %v301 = vpow.pop %v300
    %v302 = vadd.f32 %v301, 1.0
    %v303 = vrcp.pop %v302
    %v304 = vmul.f32 1.0, %v303
    %v305 = vmul.f32 %v298, %v304
    %v306 = vld [vmem:[#allocation7] sm:$0xff]
    %v307 = vld [vmem:[#allocation7 + $0x8] sm:$0xff]
    %v308 = vld [vmem:[#allocation7 + $0x10] sm:$0xff]
    %v309 = vld [vmem:[#allocation7 + $0x18] sm:$0xff]
    %v310 = vld [vmem:[#allocation7 + $0x20] sm:$0xff]
    %v311 = vld [vmem:[#allocation7 + $0x28] sm:$0xff]
    %v312 = vld [vmem:[#allocation7 + $0x30] sm:$0xff]
    %v313 = vld [vmem:[#allocation7 + $0x38] sm:$0xff]
    %v314 = vld [vmem:[#allocation7 + $0x40] sm:$0xff]
    %v315 = vld [vmem:[#allocation7 + $0x48] sm:$0xff]
    %v316 = vld [vmem:[#allocation7 + $0x50] sm:$0xff]
    %v317 = vld [vmem:[#allocation7 + $0x58] sm:$0xff]
    %v318 = vld [vmem:[#allocation7 + $0x60] sm:$0xff]
    %v319 = vld [vmem:[#allocation7 + $0x68] sm:$0xff]
    %v320 = vld [vmem:[#allocation7 + $0x70] sm:$0xff]
    %v321 = vld [vmem:[#allocation7 + $0x78] sm:$0xff]
    %v322 = vlaneseq
    %v323 = vshrl.u32 %v322, 7
    %v324 = vsub.s32 6, %v323
    %v325 = vrot.slane %v62, %v324
    %326 = vmatprep.subr.mxu0 0.0
    %327 = vmatpush1.msra.mxu0 %v306
    %328 = vmatprep.subr.mxu0 0.0
    %329 = vmatpush1.msra.mxu0 %v307
    %330 = vmatprep.subr.mxu0 0.0
    %331 = vmatpush1.msra.mxu0 %v308
    %332 = vmatprep.subr.mxu0 0.0
    %333 = vmatpush1.msra.mxu0 %v309
    %334 = vmatprep.subr.mxu0 0.0
    %335 = vmatpush1.msra.mxu0 %v310
    %336 = vmatprep.subr.mxu0 0.0
    %337 = vmatpush1.msra.mxu0 %v311
    %338 = vmatprep.subr.mxu0 0.0
    %339 = vmatpush1.msra.mxu0 %v312
    %340 = vmatprep.subr.mxu0 0.0
    %341 = vmatpush1.msra.mxu0 %v313
    %342 = vmatprep.subr.mxu0 0.0
    %343 = vmatpush1.msra.mxu0 %v314
    %344 = vmatprep.subr.mxu0 0.0
    %345 = vmatpush1.msra.mxu0 %v315
    %346 = vmatprep.subr.mxu0 0.0
    %347 = vmatpush1.msra.mxu0 %v316
    %348 = vmatprep.subr.mxu0 0.0
    %349 = vmatpush1.msra.mxu0 %v317
    %350 = vmatprep.subr.mxu0 0.0
    %351 = vmatpush1.msra.mxu0 %v318
    %352 = vmatprep.subr.mxu0 0.0
    %353 = vmatpush1.msra.mxu0 %v319
    %354 = vmatprep.subr.mxu0 0.0
    %355 = vmatpush1.msra.mxu0 %v320
    %356 = vmatprep.subr.mxu0 0.0
    %357 = vmatpush1.msra.mxu0 %v321
    %358 = vmatprep.subr.mxu0 0.0
    %359 = vmatpush1.msra.mxu0 0.0
    %360 = vmatprep.subr.mxu0 0.0
    %361 = vmatpush1.msra.mxu0 0.0
    %362 = vmatprep.subr.mxu0 0.0
    %363 = vmatpush1.msra.mxu0 0.0
    %364 = vmatprep.subr.mxu0 0.0
    %365 = vmatpush1.msra.mxu0 0.0
    %366 = vmatprep.subr.mxu0 0.0
    %367 = vmatpush1.msra.mxu0 0.0
    %368 = vmatprep.subr.mxu0 0.0
    %369 = vmatpush1.msra.mxu0 0.0
    %370 = vmatprep.subr.mxu0 0.0
    %371 = vmatpush1.msra.mxu0 0.0
    %372 = vmatprep.subr.mxu0 0.0
    %373 = vmatpush1.msra.mxu0 0.0
    %374 = vmatprep.subr.mxu0 0.0
    %375 = vmatpush1.msra.mxu0 0.0
    %376 = vmatprep.subr.mxu0 0.0
    %377 = vmatpush1.msra.mxu0 0.0
    %378 = vmatprep.subr.mxu0 0.0
    %379 = vmatpush1.msra.mxu0 0.0
    %380 = vmatprep.subr.mxu0 0.0
    %381 = vmatpush1.msra.mxu0 0.0
    %382 = vmatprep.subr.mxu0 0.0
    %383 = vmatpush1.msra.mxu0 0.0
    %384 = vmatprep.subr.mxu0 0.0
    %385 = vmatpush1.msra.mxu0 0.0
    %386 = vmatprep.subr.mxu0 0.0
    %387 = vmatpush1.msra.mxu0 0.0
    %388 = vmatprep.subr.mxu0 0.0
    %389 = vmatpush1.msra.mxu0 0.0
    %390 = vmatprep.mubr.f32.mxu0 0.0
    %391 = vmatmul.mubr.f32.gmra.mrb[0].mxu0 %v305
    %v392 = vpop.f32.mrb[0].mxu0
    %v393 = vadd.f32 %v325, %v392
    %v394 = vpop.f32.mrb[0].mxu0
    %395 = vdwg.mxu0
    %396 = vst [vmem:[#allocation8] sm:$0xff] %v393
    // Predicated region
    $region34: #{forward.1} parent=1 // pred_check
      _
    $region35: #{forward.1} parent=1 // pred_check_branch
      %398 = sbr.rel (0) target = $region37
    $region36: #{forward.1} parent=1 // pred_region
      %s400 = ssub.s32 128, 128
      %401 = vsyncadd [#allocation4], %s400
      %s403 = sshll.u32 [#allocation8], 4
      %s404 = int_to_ptr.vmem [resolvable:$true] %s403
      %406 = dma.vmem_to_hbm [thread:$0]  %s404, 128, %s5, [#allocation4]
    $region37: #{forward.1} parent=1 // pred_fallthru
      _
    // Predicated region
    $region38: #{forward.1} parent=1 // pred_check
      _
    $region39: #{forward.1} parent=1 // pred_check_branch
      %408 = sbr.rel (0) target = $region41
    $region40: #{forward.1} parent=1 // pred_region
      %409 = dma.done [#allocation4], 128
    $region41: #{forward.1} parent=1 // pred_fallthru
      _
    %410 = vsyncpa [#allocation3], 1
    %411 = vsyncpa [#allocation6], 1
    %412 = vsyncpa [#allocation4], 1

</llo_original>
